<compile_context>
chip_gen: v7x
topology: tpu7x:2x2x1
jax: 0.10.0
libtpu: 0.0.40
codegen_flags: <defaults>
</compile_context>

<pallas_src>
import functools

import jax
import jax.numpy as jnp
from jax.experimental import pallas as pl
from jax.experimental.pallas import tpu as pltpu


def _round_up(x, k):
    return ((x + k - 1) // k) * k


def gmm_kernel(xf_ref, w_ref, out_ref, *, sig_off):
    """One batch tile: single small MXU matmul -> packed [mus | sigmas] block."""
    xf = xf_ref[...]                      # (TB, K)      K = m + m(m+1)/2
    w = w_ref[...]                        # (K, n_out)   VMEM-resident slab

    # Columns [0, n) of w give mus; columns [sig_off, sig_off+n) give sigma^2
    # (Gram weights).  Padded columns are zero.
    y = jnp.dot(xf, w, preferred_element_type=jnp.float32)   # (TB, n_out)

    # sqrt only on the sigma lanes; clamp first (quadratic form can round < 0).
    lane = jax.lax.broadcasted_iota(jnp.int32, y.shape, 1)
    sig = jnp.sqrt(jnp.maximum(y, 0.0))
    out_ref[...] = jnp.where(lane >= sig_off, sig, y)        # one dense store


@functools.partial(jax.jit, static_argnames=("max_batch_tile",))
def gaussian_mixture_forward(x, p, mu, s, *, max_batch_tile=2048):
    x = x.astype(jnp.float32)
    p = p.astype(jnp.float32)
    mu = mu.astype(jnp.float32)
    s = s.astype(jnp.float32)

    B, m = x.shape
    n = p.shape[0]

    pairs = [(k, l) for k in range(m) for l in range(k, m)]
    q = len(pairs)
    K = m + q

    # Packed output layout: mus in lanes [0, n), sigmas in lanes
    # [sig_off, sig_off + n); total width one multiple of 128.
    sig_off = _round_up(n, 8)
    n_out = _round_up(sig_off + n, 128)

    # ---- parameter-only weight slab (single concatenate; cacheable) ----------
    # Gram matrices: sigma_i(x)^2 = x^T (s_i^T s_i) x.
    G = jnp.einsum("ijk,ijl->ikl", s, s)                          # (n, m, m)
    quad_w = jnp.stack(
        [(1.0 if k == l else 2.0) * G[:, k, l] for (k, l) in pairs], axis=0)  # (q, n)
    mus_block = jnp.concatenate(
        [mu.T, jnp.zeros((q, n), jnp.float32)], axis=0)           # (K, n)
    sig_block = jnp.concatenate(
        [jnp.zeros((m, n), jnp.float32), quad_w], axis=0)         # (K, n)
    w = jnp.concatenate(
        [mus_block,
         jnp.zeros((K, sig_off - n), jnp.float32),
         sig_block,
         jnp.zeros((K, n_out - sig_off - n), jnp.float32)],
        axis=1)                                                   # (K, n_out)

    # ---- feature map: [x_k] ++ [x_k * x_l, k <= l]  (tiny fused XLA ops) -----
    quad_feat = jnp.stack([x[:, k] * x[:, l] for (k, l) in pairs], axis=-1)  # (B, q)
    x_feat = jnp.concatenate([x, quad_feat], axis=-1)                        # (B, K)

    # ---- batch tiling: big tiles, but >= 2 grid steps when B > 8 (v7x) -------
    TB = _round_up(B, 8)
    if B > 8:
        TB = min(TB, _round_up(-(-B // 2), 8))
    TB = min(TB, max_batch_tile)
    B_pad = _round_up(B, TB)

    xf_pad = jnp.zeros((B_pad, K), jnp.float32).at[:B, :].set(x_feat)

    kernel = functools.partial(gmm_kernel, sig_off=sig_off)
    out = pl.pallas_call(
        kernel,
        out_shape=jax.ShapeDtypeStruct((B_pad, n_out), jnp.float32),
        grid=(B_pad // TB,),
        in_specs=[
            # x_feat tiles stream over the batch axis (double-buffered).
            pl.BlockSpec((TB, K), lambda i: (i, 0)),
            # Weight slab: constant block index -> stays resident in VMEM.
            pl.BlockSpec((K, n_out), lambda i: (0, 0)),
        ],
        out_specs=pl.BlockSpec((TB, n_out), lambda i: (i, 0)),
        compiler_params=pltpu.CompilerParams(
            dimension_semantics=("parallel",)),
    )(xf_pad, w)

    mus = out[:B, :n]
    sigmas = out[:B, sig_off:sig_off + n]

    # Batch-independent softmax + broadcast (module returns a dense (B, n)).
    pis = jnp.broadcast_to(jax.nn.softmax(p), (B, n))
    return pis, mus, sigmas


def reference_forward(x, p, mu, s):
    pis = jax.nn.softmax(p)[None, :].repeat(x.shape[0], axis=0)
    mus = x @ mu.T
    y = jnp.einsum("njk,bk->bnj", s, x)
    sigmas = jnp.sqrt(jnp.sum(y * y, axis=-1))
    return pis, mus, sigmas


if __name__ == "__main__":
    n, m = 10, 2
    B = 8

    key = jax.random.PRNGKey(0)
    kx, kp, kmu, ks = jax.random.split(key, 4)

    # Deterministic inputs matching the module's __init__ shapes/scales.
    x = jax.random.normal(kx, (B, m), dtype=jnp.float32)
    p = 0.05 * jax.random.normal(kp, (n,), dtype=jnp.float32)
    mu = 1.0 * jax.random.normal(kmu, (n, m), dtype=jnp.float32)
    s = 0.2 * jax.random.normal(ks, (n, m, m), dtype=jnp.float32) / m

    pis, mus, sigmas = gaussian_mixture_forward(x, p, mu, s)
    jax.block_until_ready((pis, mus, sigmas))

    pis_r, mus_r, sigmas_r = reference_forward(x, p, mu, s)
    assert jnp.allclose(pis, pis_r, atol=1e-4, rtol=1e-4)
    assert jnp.allclose(mus, mus_r, atol=1e-4, rtol=1e-4)
    assert jnp.allclose(sigmas, sigmas_r, atol=1e-4, rtol=1e-4)

    print("KERNEL_OK")
</pallas_src>

<mosaic_0001>
module attributes {stable_mosaic.version = 11 : i64} {
  func.func @gmm_kernel(%arg0: i32, %arg1: memref<8x5xf32, #tpu.memory_space<vmem>>, %arg2: memref<5x128xf32, #tpu.memory_space<vmem>>, %arg3: memref<8x128xf32, #tpu.memory_space<vmem>>) attributes {dimension_semantics = [#tpu.dimension_semantics<parallel>], iteration_bounds = array<i64: 1>, scalar_prefetch = 0 : i64, scratch_operands = 0 : i64, tpu.core_type = #tpu.core_type<tc>, window_params = [{transform_indices = @transform_0, window_bounds = array<i64: 8, 5>}, {pipeline_mode = #tpu.pipeline_mode<synchronous>, transform_indices = @transform_1, window_bounds = array<i64: 5, 128>}, {transform_indices = @transform_2, window_bounds = array<i64: 8, 128>}]} {
    %c0 = arith.constant 0 : index
    %c0_0 = arith.constant 0 : index
    %0 = vector.load %arg1[%c0, %c0_0] : memref<8x5xf32, #tpu.memory_space<vmem>>, vector<8x5xf32>
    %c0_1 = arith.constant 0 : index
    %c0_2 = arith.constant 0 : index
    %1 = vector.load %arg2[%c0_1, %c0_2] : memref<5x128xf32, #tpu.memory_space<vmem>>, vector<5x128xf32>
    %cst = arith.constant dense<0.000000e+00> : vector<8x128xf32>
    %2 = tpu.matmul %0, %1, %cst {dimension_numbers = #tpu.dot_dimension_numbers<[1], [0], [0], [1], [0, 0, 1, 1], [], []>} : vector<8x5xf32>, vector<5x128xf32>, vector<8x128xf32> -> vector<8x128xf32>
    %3 = tpu.iota {dimensions = array<i32: 1>} : vector<8x128xi32>
    %cst_3 = arith.constant 0.000000e+00 : f32
    %4 = vector.broadcast %cst_3 : f32 to vector<8x128xf32>
    %5 = arith.maximumf %2, %4 : vector<8x128xf32>
    %6 = math.sqrt %5 : vector<8x128xf32>
    %c16_i32 = arith.constant 16 : i32
    %7 = vector.broadcast %c16_i32 : i32 to vector<8x128xi32>
    %8 = arith.cmpi sge, %3, %7 : vector<8x128xi32>
    %9 = arith.select %8, %6, %2 : vector<8x128xi1>, vector<8x128xf32>
    %c0_4 = arith.constant 0 : index
    %c0_5 = arith.constant 0 : index
    %10 = vector.load %arg3[%c0_4, %c0_5] : memref<8x128xf32, #tpu.memory_space<vmem>>, vector<8x128xf32>
    tpu.vector_store %arg3[%c0_4, %c0_5], %9 {strides = array<i32>} : memref<8x128xf32, #tpu.memory_space<vmem>>, vector<8x128xf32>,
    return
  }
  func.func @transform_0(%arg0: i32) -> (i32, i32) {
    %c0_i32 = arith.constant 0 : i32
    %c0_i32_0 = arith.constant 0 : i32
    return %arg0, %c0_i32 : i32, i32
  }
  func.func @transform_1(%arg0: i32) -> (i32, i32) {
    %c0_i32 = arith.constant 0 : i32
    %c0_i32_0 = arith.constant 0 : i32
    %c0_i32_1 = arith.constant 0 : i32
    return %c0_i32, %c0_i32_0 : i32, i32
  }
  func.func @transform_2(%arg0: i32) -> (i32, i32) {
    %c0_i32 = arith.constant 0 : i32
    %c0_i32_0 = arith.constant 0 : i32
    return %arg0, %c0_i32 : i32, i32
  }
}

</mosaic_0001>

<llo_original>
// kernel: gaussian_mixture_forward.1
$region0: #{gaussian_mixture_forward.1}
  #allocation0 [shape = 'u32[]', space=smem, size = 0x4, offset = 0x4, fixed_abs, tag = 'smem constant byte address 0x4 - core index']
  #allocation1 [shape = 'u32[144,128]{1,0:T(1,128)}', space=vmem, size = 0x12000, scoped, tag = 'internal scratch']
  %s0 = inlined_call_operand.vmem [shape: f32[8,5], index: 0, kind: input, shape index: {}]
  %s1 = inlined_call_operand.vmem [shape: f32[5,128], index: 1, kind: input, shape index: {}]
  %s2 = inlined_call_operand.vmem [shape: f32[8,128], index: 2, kind: output, shape index: {}]
  %s3 = sld [smem:[#allocation0]]
  $region18: #{gaussian_mixture_forward.1} parent=0
    _
  %s5 = ssub.s32 1, %s3
  %s6 = scalar_select 0, %s5, %s3
  // Predicated region
  $region2: #{gaussian_mixture_forward.1} parent=0 // pred_check
    _
  $region3: #{gaussian_mixture_forward.1} parent=0 // pred_check_branch
    %8 = sbr.rel (0) target = $region5
  $region4: #{gaussian_mixture_forward.1} parent=0 // pred_region
    _
  $region5: #{gaussian_mixture_forward.1} parent=0 // pred_fallthru
    _
  // Predicated region
  $region6: #{gaussian_mixture_forward.1} parent=0 // pred_check
    _
  $region7: #{gaussian_mixture_forward.1} parent=0 // pred_check_branch
    %10 = sbr.rel (0) target = $region9
  $region8: #{gaussian_mixture_forward.1} parent=0 // pred_region
    _
  $region9: #{gaussian_mixture_forward.1} parent=0 // pred_fallthru
    _
  %v11 = vld [vmem:[%s0] sm:$0xff]
  %v12 = vld [vmem:[%s1] sm:$0x1f]
  %vm13 = vcmask 39936
  %v15 = vsel %vm13, %v11, 0
  %vm17 = vcmask 1044480
  %v19 = vsel %vm17, %v12, 0
  %21 = vmatprep.subr.mxu0 0.0
  %22 = vmatpush1.msra.mxu0 %v19
  %23 = vmatprep.subr.mxu0 0.0
  %24 = vmatpush1.msra.mxu0 0.0
  %25 = vmatprep.subr.mxu0 0.0
  %26 = vmatpush1.msra.mxu0 0.0
  %27 = vmatprep.subr.mxu0 0.0
  %28 = vmatpush1.msra.mxu0 0.0
  %29 = vmatprep.subr.mxu0 0.0
  %30 = vmatpush1.msra.mxu0 0.0
  %31 = vmatprep.subr.mxu0 0.0
  %32 = vmatpush1.msra.mxu0 0.0
  %33 = vmatprep.subr.mxu0 0.0
  %34 = vmatpush1.msra.mxu0 0.0
  %35 = vmatprep.subr.mxu0 0.0
  %36 = vmatpush1.msra.mxu0 0.0
  %37 = vmatprep.subr.mxu0 0.0
  %38 = vmatpush1.msra.mxu0 0.0
  %39 = vmatprep.subr.mxu0 0.0
  %40 = vmatpush1.msra.mxu0 0.0
  %41 = vmatprep.subr.mxu0 0.0
  %42 = vmatpush1.msra.mxu0 0.0
  %43 = vmatprep.subr.mxu0 0.0
  %44 = vmatpush1.msra.mxu0 0.0
  %45 = vmatprep.subr.mxu0 0.0
  %46 = vmatpush1.msra.mxu0 0.0
  %47 = vmatprep.subr.mxu0 0.0
  %48 = vmatpush1.msra.mxu0 0.0
  %49 = vmatprep.subr.mxu0 0.0
  %50 = vmatpush1.msra.mxu0 0.0
  %51 = vmatprep.subr.mxu0 0.0
  %52 = vmatpush1.msra.mxu0 0.0
  %53 = vmatprep.subr.mxu0 0.0
  %54 = vmatpush1.msra.mxu0 0.0
  %55 = vmatprep.subr.mxu0 0.0
  %56 = vmatpush1.msra.mxu0 0.0
  %57 = vmatprep.subr.mxu0 0.0
  %58 = vmatpush1.msra.mxu0 0.0
  %59 = vmatprep.subr.mxu0 0.0
  %60 = vmatpush1.msra.mxu0 0.0
  %61 = vmatprep.subr.mxu0 0.0
  %62 = vmatpush1.msra.mxu0 0.0
  %63 = vmatprep.subr.mxu0 0.0
  %64 = vmatpush1.msra.mxu0 0.0
  %65 = vmatprep.subr.mxu0 0.0
  %66 = vmatpush1.msra.mxu0 0.0
  %67 = vmatprep.subr.mxu0 0.0
  %68 = vmatpush1.msra.mxu0 0.0
  %69 = vmatprep.subr.mxu0 0.0
  %70 = vmatpush1.msra.mxu0 0.0
  %71 = vmatprep.subr.mxu0 0.0
  %72 = vmatpush1.msra.mxu0 0.0
  %73 = vmatprep.subr.mxu0 0.0
  %74 = vmatpush1.msra.mxu0 0.0
  %75 = vmatprep.subr.mxu0 0.0
  %76 = vmatpush1.msra.mxu0 0.0
  %77 = vmatprep.subr.mxu0 0.0
  %78 = vmatpush1.msra.mxu0 0.0
  %79 = vmatprep.subr.mxu0 0.0
  %80 = vmatpush1.msra.mxu0 0.0
  %81 = vmatprep.subr.mxu0 0.0
  %82 = vmatpush1.msra.mxu0 0.0
  %83 = vmatprep.subr.mxu0 0.0
  %84 = vmatpush1.msra.mxu0 0.0
  %85 = vmatprep.mubr.f32.mxu0 0.0
  %86 = vmatmul.mubr.f32.gmra.mrb[0].mxu0 %v15
  %v87 = vpop.f32.mrb[0].mxu0
  %v88 = vadd.f32 0.0, %v87
  %v89 = vpop.f32.mrb[0].mxu0
  %90 = vdwg.mxu0
  %v91 = vlaneseq
  %v92 = vand.u32 %v91, 127
  %v93 = vmax.f32 %v88, 0.0
  %v94 = vrsqrt.pop %v93
  %v95 = vmul.f32 %v93, %v94
  %vm96 = vcmp.eq.f32.partialorder %v93, inf
  %v97 = vsel %vm96, %v93, %v95
  %vm98 = vcmp.eq.f32.partialorder %v93, 0.0
  %v99 = vand.u32 %v93, 2147483648
  %v100 = vsel %vm98, %v99, %v97
  %vm101 = vcmp.ge.s32.totalorder %v92, 16
  %v102 = vsel %vm101, %v100, %v88
  %103 = vst [vmem:[%s2] sm:$0xff] %v102
  // Predicated region
  $region10: #{gaussian_mixture_forward.1} parent=0 // pred_check
    _
  $region11: #{gaussian_mixture_forward.1} parent=0 // pred_check_branch
    %105 = sbr.rel (0) target = $region13
  $region12: #{gaussian_mixture_forward.1} parent=0 // pred_region
    _
  $region13: #{gaussian_mixture_forward.1} parent=0 // pred_fallthru
    _
  // Predicated region
  $region14: #{gaussian_mixture_forward.1} parent=0 // pred_check
    _
  $region15: #{gaussian_mixture_forward.1} parent=0 // pred_check_branch
    %107 = sbr.rel (0) target = $region17
  $region16: #{gaussian_mixture_forward.1} parent=0 // pred_region
    _
  $region17: #{gaussian_mixture_forward.1} parent=0 // pred_fallthru
    _

</llo_original>
